<compile_context>
chip_gen: v7x
topology: tpu7x:2x2x1
jax: 0.10.0
libtpu: 0.0.40
codegen_flags: <defaults>
</compile_context>

<pallas_src>
import jax
import jax.numpy as jnp
from jax.experimental import pallas as pl
from jax.experimental.pallas import tpu as pltpu


def _round_up(x: int, m: int) -> int:
    return (x + m - 1) // m * m


def _cdiv(a: int, b: int) -> int:
    return -(-a // b)


# ----------------------------------------------------------------------------
# Kernels
# ----------------------------------------------------------------------------
def _vdn_whole_array_kernel(q_ref, o_ref):
    # q_ref: (B, N, Q) fully resident in VMEM; o_ref: (B, 1, Q).
    # Sublane reduction over the agent axis, f32 accumulation.
    o_ref[...] = jnp.sum(
        q_ref[...].astype(jnp.float32), axis=1, keepdims=True
    ).astype(o_ref.dtype)


def _vdn_lane_sum_kernel(q_ref, o_ref):
    # q_ref: (N, TL) lane-dense tile; o_ref: (1, TL).
    # One full-tile read + sublane reduce (no per-row 1/8-occupancy slices).
    o_ref[...] = jnp.sum(
        q_ref[...].astype(jnp.float32), axis=0, keepdims=True
    ).astype(o_ref.dtype)


# ----------------------------------------------------------------------------
# Wrapper
# ----------------------------------------------------------------------------
_FAST_PATH_PADDED_BYTES = 8 << 20  # sublane/lane-padded VMEM footprint cutoff


def vdn_forward(
    agent_qs: jax.Array,
    *,
    target_block_bytes: int = 2 << 20,  # v6e/v5e sweet spot; use 4-8 MiB on v7x
    force_tiled: bool = False,
) -> jax.Array:
    """Sum agent Q-values over the agent axis (dim=1), keepdim=True."""
    B, N, Q = agent_qs.shape
    dtype = agent_qs.dtype
    itemsize = jnp.dtype(dtype).itemsize

    # ---------------- Fast path: whole array in VMEM, single grid step ------
    # VMEM footprint including (8, 128) tile padding of the minor (N, Q) /
    # (1, Q) dims for input and output buffers.
    sub_in = _round_up(N, 8)
    lanes = _round_up(max(Q, 1), 128)
    padded_bytes = B * (sub_in + 8) * lanes * itemsize
    if not force_tiled and padded_bytes <= _FAST_PATH_PADDED_BYTES:
        return pl.pallas_call(
            _vdn_whole_array_kernel,
            out_shape=jax.ShapeDtypeStruct((B, 1, Q), dtype),
            in_specs=[pl.BlockSpec(memory_space=pltpu.MemorySpace.VMEM)],
            out_specs=pl.BlockSpec(memory_space=pltpu.MemorySpace.VMEM),
            compiler_params=pltpu.CompilerParams(vmem_limit_bytes=48 << 20),
        )(agent_qs)

    # ---------------- Tiled lane-dense path (large inputs) ------------------
    # Relayout (B, N, Q) -> (N, B*Q) so the big B*Q product sits on the lane
    # axis.  This is the one remaining HBM copy; see TODO(synk) above.
    L = B * Q
    x = agent_qs.transpose(1, 0, 2).reshape(N, L)

    l128 = _round_up(L, 128)

    # ~target_block_bytes of *real* input data per block, multiple of 128 lanes.
    tl = max(128, (target_block_bytes // max(N * itemsize, 1)) // 128 * 128)

    # VMEM budget: 2x double-buffered (N, tl) input + 2x (1, tl) output, both
    # sublane-padded to 8 rows -> 4 * 8 * tl * itemsize.  Keep under ~40 MiB.
    max_tl_vmem = ((40 << 20) // (4 * 8 * itemsize)) // 128 * 128
    tl = min(tl, max_tl_vmem, l128)

    # Guarantee >= 2 grid steps when the array allows it, so v7x can shard the
    # "parallel" axis across its two TensorCores.
    if _cdiv(l128, tl) < 2 and l128 >= 256:
        tl = _round_up(l128 // 2, 128)

    grid = (_cdiv(L, tl),)  # ragged last tile handled by partial-block clamping
    vmem_need = 4 * 8 * tl * itemsize

    out_flat = pl.pallas_call(
        _vdn_lane_sum_kernel,
        out_shape=jax.ShapeDtypeStruct((1, L), dtype),  # no pad, no output slice
        grid_spec=pltpu.PrefetchScalarGridSpec(
            num_scalar_prefetch=0,
            grid=grid,
            in_specs=[pl.BlockSpec((N, tl), lambda j: (0, j))],
            out_specs=pl.BlockSpec((1, tl), lambda j: (0, j)),
        ),
        compiler_params=pltpu.CompilerParams(
            dimension_semantics=("parallel",),
            vmem_limit_bytes=min(vmem_need + (16 << 20), 56 << 20),
        ),
    )(x)

    # (1, B*Q) -> (B, 1, Q): pure reshape of contiguous data (no copy).
    return out_flat.reshape(B, 1, Q)


if __name__ == "__main__":
    key = jax.random.PRNGKey(0)

    # 1) Canonical small VDN shapes (fast path: whole array, single call).
    B, N_AGENTS, Q = 2, 4, 1
    agent_qs = jax.random.normal(key, (B, N_AGENTS, Q), dtype=jnp.float32)
    out = jax.block_until_ready(vdn_forward(agent_qs))
    ref = jnp.sum(agent_qs, axis=1, keepdims=True)
    assert out.shape == (B, 1, Q), out.shape
    assert jnp.allclose(out, ref, atol=1e-6), (out, ref)

    # 2) bf16 input, non-aligned dims (still fast path; f32 accumulation).
    B2, N2, Q2 = 33, 5, 6
    aq2 = jax.random.normal(jax.random.PRNGKey(1), (B2, N2, Q2), dtype=jnp.bfloat16)
    out2 = jax.block_until_ready(vdn_forward(aq2))
    ref2 = jnp.sum(aq2.astype(jnp.float32), axis=1, keepdims=True).astype(jnp.bfloat16)
    assert out2.shape == (B2, 1, Q2), out2.shape
    assert jnp.allclose(
        out2.astype(jnp.float32), ref2.astype(jnp.float32), atol=1e-1, rtol=1e-2
    ), (out2, ref2)

    # 3) Tiled lane-dense fallback: multi-step grid + ragged last tile.
    B3, N3, Q3 = 257, 3, 5
    aq3 = jax.random.normal(jax.random.PRNGKey(2), (B3, N3, Q3), dtype=jnp.float32)
    out3 = jax.block_until_ready(vdn_forward(aq3, force_tiled=True))
    ref3 = jnp.sum(aq3, axis=1, keepdims=True)
    assert out3.shape == (B3, 1, Q3), out3.shape
    assert jnp.allclose(out3, ref3, atol=1e-5), (out3, ref3)

    print("KERNEL_OK")
</pallas_src>

<mosaic_0001>
module attributes {stable_mosaic.version = 11 : i64} {
  func.func @_vdn_whole_array_kernel(%arg0: memref<2x4x1xf32, #tpu.memory_space<vmem>>, %arg1: memref<2x1x1xf32, #tpu.memory_space<vmem>>) attributes {dimension_semantics = [], scalar_prefetch = 0 : i64, scratch_operands = 0 : i64, tpu.core_type = #tpu.core_type<tc>} {
    %c0 = arith.constant 0 : index
    %c0_0 = arith.constant 0 : index
    %c0_1 = arith.constant 0 : index
    %0 = vector.load %arg0[%c0, %c0_0, %c0_1] : memref<2x4x1xf32, #tpu.memory_space<vmem>>, vector<2x4x1xf32>
    %cst = arith.constant dense<0.000000e+00> : vector<2x1xf32>
    %1 = vector.multi_reduction <add>, %0, %cst [1] : vector<2x4x1xf32> to vector<2x1xf32>
    %2 = vector.shape_cast %1 : vector<2x1xf32> to vector<2x1x1xf32>
    %c0_2 = arith.constant 0 : index
    %c0_3 = arith.constant 0 : index
    %c0_4 = arith.constant 0 : index
    %3 = vector.load %arg1[%c0_2, %c0_3, %c0_4] : memref<2x1x1xf32, #tpu.memory_space<vmem>>, vector<2x1x1xf32>
    tpu.vector_store %arg1[%c0_2, %c0_3, %c0_4], %2 {strides = array<i32>} : memref<2x1x1xf32, #tpu.memory_space<vmem>>, vector<2x1x1xf32>,
    return
  }
}

</mosaic_0001>

<llo_original>
// kernel: tpu_custom_call.1
$region0: #{tpu_custom_call.1}
  #allocation0 [shape = 'u32[]', space=smem, size = 0x4, offset = 0x4, fixed_abs, tag = 'smem constant byte address 0x4 - core index']
  #allocation1 [shape = 'u32[144,128]{1,0:T(1,128)}', space=vmem, size = 0x12000, scoped, tag = 'internal scratch']
  %s0 = inlined_call_operand.vmem [shape: f32[2,4,1], index: 0, kind: input, shape index: {}]
  %s1 = inlined_call_operand.vmem [shape: f32[2,1,1], index: 1, kind: output, shape index: {}]
  %s2 = sld [smem:[#allocation0]]
  $region14: #{tpu_custom_call.1} parent=0
    _
  %s4 = ssub.s32 1, %s2
  %s5 = scalar_select 0, %s4, %s2
  // Predicated region
  $region2: #{tpu_custom_call.1} parent=0 // pred_check
    _
  $region3: #{tpu_custom_call.1} parent=0 // pred_check_branch
    %7 = sbr.rel (0) target = $region5
  $region4: #{tpu_custom_call.1} parent=0 // pred_region
    _
  $region5: #{tpu_custom_call.1} parent=0 // pred_fallthru
    _
  %v8 = vld [vmem:[%s0] sm:$0xf]
  %v9 = vld [vmem:[%s0 + $0x4] sm:$0xf]
  %vm10 = vcmask 3072
  %v11 = vsel %vm10, %v8, 0.0
  %v12 = vrot.slane %v11, 4
  %v13 = vadd.f32 %v11, %v12
  %v14 = vrot.slane %v13, 2
  %v15 = vadd.f32 %v13, %v14
  %v16 = vrot.slane %v15, 1
  %v17 = vadd.f32 %v15, %v16
  %v18 = vsel %vm10, %v9, 0.0
  %v19 = vrot.slane %v18, 4
  %v20 = vadd.f32 %v18, %v19
  %v21 = vrot.slane %v20, 2
  %v22 = vadd.f32 %v20, %v21
  %v23 = vrot.slane %v22, 1
  %v24 = vadd.f32 %v22, %v23
  %vm25 = vcmask 0
  %26 = vst.msk [vmem:[%s1] sm:$0x1] %vm25, %v17
  %27 = vst.msk [vmem:[%s1 + $0x1] sm:$0x1] %vm25, %v24
  // Predicated region
  $region6: #{tpu_custom_call.1} parent=0 // pred_check
    _
  $region7: #{tpu_custom_call.1} parent=0 // pred_check_branch
    %29 = sbr.rel (0) target = $region9
  $region8: #{tpu_custom_call.1} parent=0 // pred_region
    _
  $region9: #{tpu_custom_call.1} parent=0 // pred_fallthru
    _
  // Predicated region
  $region10: #{tpu_custom_call.1} parent=0 // pred_check
    _
  $region11: #{tpu_custom_call.1} parent=0 // pred_check_branch
    %31 = sbr.rel (0) target = $region13
  $region12: #{tpu_custom_call.1} parent=0 // pred_region
    _
  $region13: #{tpu_custom_call.1} parent=0 // pred_fallthru
    _

</llo_original>
